<compile_context>
chip_gen: v7x
topology: tpu7x:2x2x1
jax: 0.10.0
libtpu: 0.0.40
codegen_flags: <defaults>
</compile_context>

<pallas_src>
import math
from functools import partial

import jax
import jax.numpy as jnp
from jax.experimental import pallas as pl
from jax.experimental.pallas import tpu as pltpu


def _extraction_kernel(state_ref, action_ref, wq_ref, wkv_ref, wo_ref, bias_ref,
                       sel_ref, bc_ref, gsum_ref, avg_ref, xmat_ref,
                       out_ref, attw_ref, *, num_heads, seq_len, embed_dim):
    f32 = jnp.float32
    H, S, E = num_heads, seq_len, embed_dim
    SE = S * E

    sw = state_ref[...]                        # (BT, S*Ds)  per-batch wide state rows
    a2 = action_ref[...]                       # (BT, Da)

    bkv = bias_ref[0:1, :]                     # (1, 2*S*E)
    bq = bias_ref[1:2, :SE]                    # (1, S*E)
    bo = bias_ref[2:3, :E]                     # (1, E)

    # K/V projections directly in per-batch wide layout: lane index = t*E + e.
    kv = jnp.dot(sw, wkv_ref[...], preferred_element_type=f32) + bkv     # (BT, 2*S*E)
    k_wide = kv[:, :SE]                        # clean slice at a 128-lane boundary
    v_wide = kv[:, SE:]

    # Query projection (1/sqrt(hd) folded in), pre-tiled over the S key positions.
    q_wide = jnp.dot(a2, wq_ref[...], preferred_element_type=f32) + bq   # (BT, S*E)

    # All-head scores in one matmul; columns ordered h*S + t.
    scores = jnp.dot(k_wide * q_wide, sel_ref[...],
                     preferred_element_type=f32)                         # (BT, H*S)

    # Grouped softmax over key positions — one wide chain for all heads.
    # Only the per-head max needs (cheap, independent) 8-lane slices.
    m_list = [jnp.max(scores[:, h * S:(h + 1) * S], axis=-1, keepdims=True)
              for h in range(H)]
    m_h = jnp.concatenate(m_list, axis=-1)                               # (BT, H)
    m_wide = jnp.dot(m_h, bc_ref[...], preferred_element_type=f32)       # (BT, H*S) per-group max
    p = jnp.exp(scores - m_wide)
    l_wide = jnp.dot(p, gsum_ref[...], preferred_element_type=f32)       # (BT, H*S) group sums
    inv = pl.reciprocal(l_wide, approx=True)                             # EUP slot
    inv = inv * (2.0 - l_wide * inv)                                     # one Newton step
    a = p * inv                                                          # (BT, H*S) attn weights

    # Head-averaged attention weights, directly in (batch, key) layout.
    attw_ref[...] = jnp.dot(a, avg_ref[...], preferred_element_type=f32)  # (BT, S)

    # Weighted values + output projection (key-sum folded into wo_wide).
    a_exp = jnp.dot(a, xmat_ref[...], preferred_element_type=f32)         # (BT, S*E)
    out_ref[...] = jnp.dot(a_exp * v_wide, wo_ref[...],
                           preferred_element_type=f32) + bo               # (BT, E)


def extraction_forward(state, action, params, num_heads, batch_tile=None):
    """Pallas forward of ExtractionModule. Returns (attn_output (B,E), attn_weights (B,S))."""
    B, S, Ds = state.shape
    _, Da = action.shape
    E = params["ws"].shape[0]
    H = num_heads
    assert E % H == 0
    hd = E // H
    SE = S * E
    f32 = jnp.float32
    hi = jax.lax.Precision.HIGHEST

    # ---- fold the embedding Linears into the attention in-projections --------------------
    #   k = (state @ Ws^T + bs) @ Wk^T + bk == state @ (Ws^T Wk^T) + (bs Wk^T + bk), etc.
    wq, wk, wv = jnp.split(params["in_proj_w"], 3, axis=0)
    bq, bk, bv = jnp.split(params["in_proj_b"], 3)
    scale = 1.0 / math.sqrt(hd)
    ws_t = params["ws"].T.astype(f32)                                    # (Ds, E)
    wa_t = params["wa"].T.astype(f32)                                    # (Da, E)
    wq_f = jnp.matmul(wa_t, wq.T, precision=hi) * scale                  # (Da, E) scale folded
    bq_f = (jnp.matmul(params["ba"], wq.T, precision=hi) + bq) * scale   # (E,)
    wk_f = jnp.matmul(ws_t, wk.T, precision=hi)                          # (Ds, E)
    bk_f = jnp.matmul(params["bs"], wk.T, precision=hi) + bk
    wv_f = jnp.matmul(ws_t, wv.T, precision=hi)
    bv_f = jnp.matmul(params["bs"], wv.T, precision=hi) + bv

    # ---- build per-batch "wide" layout weights (lane index = t*E + e) ---------------------
    eye_s = jnp.eye(S, dtype=f32)
    wkv_wide = jnp.concatenate(
        [jnp.kron(eye_s, wk_f), jnp.kron(eye_s, wv_f)], axis=1)          # (S*Ds, 2*S*E)
    wq_wide = jnp.tile(wq_f, (1, S))                                     # (Da, S*E)
    wo_wide = jnp.tile(params["wo"].T.astype(f32), (S, 1))               # (S*E, E) key-sum folded

    biases = jnp.zeros((8, 2 * SE), f32)                                 # coalesced bias slab
    biases = biases.at[0, :SE].set(jnp.tile(bk_f, S))
    biases = biases.at[0, SE:].set(jnp.tile(bv_f, S))
    biases = biases.at[1, :SE].set(jnp.tile(bq_f, S))
    biases = biases.at[2, :E].set(params["bo"].astype(f32))

    # ---- exact 0/1 bookkeeping matrices (built once here, DMA'd once) ---------------------
    r_t = jnp.arange(SE) // E                         # key position t of wide column
    r_h = (jnp.arange(SE) % E) // hd                  # head of wide column
    c_h = jnp.arange(H * S) // S                      # head of score column (h-major)
    c_t = jnp.arange(H * S) % S                       # key position of score column
    sel = ((r_t[:, None] == c_t[None, :]) &
           (r_h[:, None] == c_h[None, :])).astype(f32)                   # (S*E, H*S) head selector
    xmat = sel.T                                                         # (H*S, S*E) weight expander
    gsum = (c_h[:, None] == c_h[None, :]).astype(f32)                    # (H*S, H*S) group-sum+bcast
    bc = (jnp.arange(H)[:, None] == c_h[None, :]).astype(f32)            # (H, H*S)   max broadcast
    avg = (c_t[:, None] == jnp.arange(S)[None, :]).astype(f32) / H       # (H*S, S)   head average

    # ---- batch tiling: large tiles, >= 2 grid steps when possible (v7x megacore) ----------
    def _r8(x):
        return ((x + 7) // 8) * 8

    if batch_tile is not None:
        BT = max(8, _r8(batch_tile))
    elif B <= 8:
        BT = 8
    else:
        BT = min(256, _r8(pl.cdiv(B, 2)))        # up to 2048 flattened rows / step
    n_blk = pl.cdiv(B, BT)
    Bp = n_blk * BT

    state_w = state.reshape(B, S * Ds).astype(f32)        # per-batch wide state rows
    action_w = action.astype(f32)
    if Bp != B:
        state_w = jnp.pad(state_w, ((0, Bp - B), (0, 0)))
        action_w = jnp.pad(action_w, ((0, Bp - B), (0, 0)))

    kernel = partial(_extraction_kernel, num_heads=H, seq_len=S, embed_dim=E)
    const = lambda i: (0, 0)
    row_blk = lambda i: (i, 0)

    out, attw = pl.pallas_call(
        kernel,
        out_shape=(jax.ShapeDtypeStruct((Bp, E), f32),
                   jax.ShapeDtypeStruct((Bp, S), f32)),
        grid=(n_blk,),
        in_specs=[
            pl.BlockSpec((BT, S * Ds), row_blk),          # wide state rows
            pl.BlockSpec((BT, Da), row_blk),              # action rows
            pl.BlockSpec((Da, SE), const),                # Wq (tiled, scaled)
            pl.BlockSpec((S * Ds, 2 * SE), const),        # block-diag Wk|Wv
            pl.BlockSpec((SE, E), const),                 # Wo (key-sum folded)
            pl.BlockSpec((8, 2 * SE), const),             # coalesced biases
            pl.BlockSpec((SE, H * S), const),             # head selector
            pl.BlockSpec((H, H * S), const),              # max broadcast
            pl.BlockSpec((H * S, H * S), const),          # group sum
            pl.BlockSpec((H * S, S), const),              # head average
            pl.BlockSpec((H * S, SE), const),             # weight expander
        ],
        out_specs=(pl.BlockSpec((BT, E), row_blk),
                   pl.BlockSpec((BT, S), row_blk)),
        compiler_params=pltpu.CompilerParams(
            dimension_semantics=("parallel",)),
    )(state_w, action_w, wq_wide, wkv_wide, wo_wide, biases,
      sel, bc, gsum, avg, xmat)

    return out[:B], attw[:B]


def reference_forward(state, action, params, num_heads):
    """Pure-JAX reference replicating torch.nn.MultiheadAttention math."""
    B, S, _ = state.shape
    E = params["ws"].shape[0]
    H = num_heads
    hd = E // H
    se = state @ params["ws"].T + params["bs"]                   # (B, S, E)
    ae = action @ params["wa"].T + params["ba"]                  # (B, E)
    query = ae[:, None, :]                                       # (B, 1, E)
    wq, wk, wv = jnp.split(params["in_proj_w"], 3, axis=0)
    bq, bk, bv = jnp.split(params["in_proj_b"], 3)
    q = query @ wq.T + bq
    k = se @ wk.T + bk
    v = se @ wv.T + bv
    qh = q.reshape(B, 1, H, hd).transpose(0, 2, 1, 3)
    kh = k.reshape(B, S, H, hd).transpose(0, 2, 1, 3)
    vh = v.reshape(B, S, H, hd).transpose(0, 2, 1, 3)
    scores = jnp.einsum("bhqd,bhkd->bhqk", qh, kh) / math.sqrt(hd)
    attn = jax.nn.softmax(scores, axis=-1)                        # (B, H, 1, S)
    ctx = jnp.einsum("bhqk,bhkd->bhqd", attn, vh)
    ctx = ctx.transpose(0, 2, 1, 3).reshape(B, 1, E)
    out = ctx @ params["wo"].T + params["bo"]
    return out[:, 0, :], attn.mean(axis=1)[:, 0, :]


if __name__ == "__main__":
    B, S = 2, 8
    state_dim, action_dim = 16, 4
    embed_dim, num_heads = 32, 4

    key = jax.random.PRNGKey(0)
    keys = jax.random.split(key, 12)
    params = {
        "ws": 0.05 * jax.random.normal(keys[0], (embed_dim, state_dim), jnp.float32),
        "bs": 0.02 * jax.random.normal(keys[1], (embed_dim,), jnp.float32),
        "wa": 0.05 * jax.random.normal(keys[2], (embed_dim, action_dim), jnp.float32),
        "ba": 0.02 * jax.random.normal(keys[3], (embed_dim,), jnp.float32),
        "in_proj_w": 0.05 * jax.random.normal(keys[4], (3 * embed_dim, embed_dim), jnp.float32),
        "in_proj_b": 0.02 * jax.random.normal(keys[5], (3 * embed_dim,), jnp.float32),
        "wo": 0.05 * jax.random.normal(keys[6], (embed_dim, embed_dim), jnp.float32),
        "bo": 0.02 * jax.random.normal(keys[7], (embed_dim,), jnp.float32),
    }
    state = jax.random.normal(keys[8], (B, S, state_dim), jnp.float32)
    action = jax.random.normal(keys[9], (B, action_dim), jnp.float32)

    out, attw = extraction_forward(state, action, params, num_heads)
    out, attw = jax.block_until_ready((out, attw))

    ref_out, ref_attw = reference_forward(state, action, params, num_heads)
    assert out.shape == (B, embed_dim) and attw.shape == (B, S)
    # Folding the embedding linears into the in-projections (and the kron/wide summation order)
    # changes rounding slightly vs. the reference, hence a touch more tolerance than strict f32.
    assert jnp.allclose(out, ref_out, rtol=2e-3, atol=2e-4)
    assert jnp.allclose(attw, ref_attw, rtol=2e-3, atol=2e-4)

    # Also exercise the multi-block (n_blk >= 2) + batch-padding path.
    B2 = 20
    state2 = jax.random.normal(keys[10], (B2, S, state_dim), jnp.float32)
    action2 = jax.random.normal(keys[11], (B2, action_dim), jnp.float32)
    out2, attw2 = jax.block_until_ready(
        extraction_forward(state2, action2, params, num_heads))
    ref_out2, ref_attw2 = reference_forward(state2, action2, params, num_heads)
    assert jnp.allclose(out2, ref_out2, rtol=2e-3, atol=2e-4)
    assert jnp.allclose(attw2, ref_attw2, rtol=2e-3, atol=2e-4)

    print("KERNEL_OK")
</pallas_src>

<mosaic_0001>
module attributes {stable_mosaic.version = 11 : i64} {
  func.func @_extraction_kernel(%arg0: i32, %arg1: memref<8x128xf32, #tpu.memory_space<vmem>>, %arg2: memref<8x4xf32, #tpu.memory_space<vmem>>, %arg3: memref<4x256xf32, #tpu.memory_space<vmem>>, %arg4: memref<128x512xf32, #tpu.memory_space<vmem>>, %arg5: memref<256x32xf32, #tpu.memory_space<vmem>>, %arg6: memref<8x512xf32, #tpu.memory_space<vmem>>, %arg7: memref<256x32xf32, #tpu.memory_space<vmem>>, %arg8: memref<4x32xf32, #tpu.memory_space<vmem>>, %arg9: memref<32x32xf32, #tpu.memory_space<vmem>>, %arg10: memref<32x8xf32, #tpu.memory_space<vmem>>, %arg11: memref<32x256xf32, #tpu.memory_space<vmem>>, %arg12: memref<8x32xf32, #tpu.memory_space<vmem>>, %arg13: memref<8x8xf32, #tpu.memory_space<vmem>>) attributes {dimension_semantics = [#tpu.dimension_semantics<parallel>], iteration_bounds = array<i64: 1>, scalar_prefetch = 0 : i64, scratch_operands = 0 : i64, tpu.core_type = #tpu.core_type<tc>, window_params = [{transform_indices = @transform_0, window_bounds = array<i64: 8, 128>}, {transform_indices = @transform_1, window_bounds = array<i64: 8, 4>}, {pipeline_mode = #tpu.pipeline_mode<synchronous>, transform_indices = @transform_2, window_bounds = array<i64: 4, 256>}, {pipeline_mode = #tpu.pipeline_mode<synchronous>, transform_indices = @transform_3, window_bounds = array<i64: 128, 512>}, {pipeline_mode = #tpu.pipeline_mode<synchronous>, transform_indices = @transform_4, window_bounds = array<i64: 256, 32>}, {pipeline_mode = #tpu.pipeline_mode<synchronous>, transform_indices = @transform_5, window_bounds = array<i64: 8, 512>}, {pipeline_mode = #tpu.pipeline_mode<synchronous>, transform_indices = @transform_6, window_bounds = array<i64: 256, 32>}, {pipeline_mode = #tpu.pipeline_mode<synchronous>, transform_indices = @transform_7, window_bounds = array<i64: 4, 32>}, {pipeline_mode = #tpu.pipeline_mode<synchronous>, transform_indices = @transform_8, window_bounds = array<i64: 32, 32>}, {pipeline_mode = #tpu.pipeline_mode<synchronous>, transform_indices = @transform_9, window_bounds = array<i64: 32, 8>}, {pipeline_mode = #tpu.pipeline_mode<synchronous>, transform_indices = @transform_10, window_bounds = array<i64: 32, 256>}, {transform_indices = @transform_11, window_bounds = array<i64: 8, 32>}, {transform_indices = @transform_12, window_bounds = array<i64: 8, 8>}]} {
    %c0 = arith.constant 0 : index
    %c0_0 = arith.constant 0 : index
    %0 = vector.load %arg1[%c0, %c0_0] : memref<8x128xf32, #tpu.memory_space<vmem>>, vector<8x128xf32>
    %c0_1 = arith.constant 0 : index
    %c0_2 = arith.constant 0 : index
    %1 = vector.load %arg2[%c0_1, %c0_2] : memref<8x4xf32, #tpu.memory_space<vmem>>, vector<8x4xf32>
    %c0_3 = arith.constant 0 : index
    %c0_4 = arith.constant 0 : index
    %2 = vector.load %arg6[%c0_3, %c0_4] : memref<8x512xf32, #tpu.memory_space<vmem>>, vector<1x512xf32>
    %c1 = arith.constant 1 : index
    %c0_5 = arith.constant 0 : index
    %3 = vector.load %arg6[%c1, %c0_5] : memref<8x512xf32, #tpu.memory_space<vmem>>, vector<1x256xf32>
    %c2 = arith.constant 2 : index
    %c0_6 = arith.constant 0 : index
    %4 = vector.load %arg6[%c2, %c0_6] : memref<8x512xf32, #tpu.memory_space<vmem>>, vector<1x32xf32>
    %c0_7 = arith.constant 0 : index
    %c0_8 = arith.constant 0 : index
    %5 = vector.load %arg4[%c0_7, %c0_8] : memref<128x512xf32, #tpu.memory_space<vmem>>, vector<128x512xf32>
    %cst = arith.constant dense<0.000000e+00> : vector<8x512xf32>
    %6 = tpu.matmul %0, %5, %cst {dimension_numbers = #tpu.dot_dimension_numbers<[1], [0], [0], [1], [0, 0, 1, 1], [], []>} : vector<8x128xf32>, vector<128x512xf32>, vector<8x512xf32> -> vector<8x512xf32>
    %7 = vector.broadcast %2 : vector<1x512xf32> to vector<8x512xf32>
    %8 = arith.addf %6, %7 : vector<8x512xf32>
    %9 = vector.extract_strided_slice %8 {offsets = [0, 0], sizes = [8, 256], strides = [1, 1]} : vector<8x512xf32> to vector<8x256xf32>
    %10 = vector.extract_strided_slice %8 {offsets = [0, 256], sizes = [8, 256], strides = [1, 1]} : vector<8x512xf32> to vector<8x256xf32>
    %c0_9 = arith.constant 0 : index
    %c0_10 = arith.constant 0 : index
    %11 = vector.load %arg3[%c0_9, %c0_10] : memref<4x256xf32, #tpu.memory_space<vmem>>, vector<4x256xf32>
    %cst_11 = arith.constant dense<0.000000e+00> : vector<8x256xf32>
    %12 = tpu.matmul %1, %11, %cst_11 {dimension_numbers = #tpu.dot_dimension_numbers<[1], [0], [0], [1], [0, 0, 1, 1], [], []>} : vector<8x4xf32>, vector<4x256xf32>, vector<8x256xf32> -> vector<8x256xf32>
    %13 = vector.broadcast %3 : vector<1x256xf32> to vector<8x256xf32>
    %14 = arith.addf %12, %13 : vector<8x256xf32>
    %15 = arith.mulf %9, %14 : vector<8x256xf32>
    %c0_12 = arith.constant 0 : index
    %c0_13 = arith.constant 0 : index
    %16 = vector.load %arg7[%c0_12, %c0_13] : memref<256x32xf32, #tpu.memory_space<vmem>>, vector<256x32xf32>
    %cst_14 = arith.constant dense<0.000000e+00> : vector<8x32xf32>
    %17 = tpu.matmul %15, %16, %cst_14 {dimension_numbers = #tpu.dot_dimension_numbers<[1], [0], [0], [1], [0, 0, 1, 1], [], []>} : vector<8x256xf32>, vector<256x32xf32>, vector<8x32xf32> -> vector<8x32xf32>
    %18 = vector.extract_strided_slice %17 {offsets = [0, 0], sizes = [8, 8], strides = [1, 1]} : vector<8x32xf32> to vector<8x8xf32>
    %cst_15 = arith.constant dense<0xFF800000> : vector<8xf32>
    %19 = vector.multi_reduction <maximumf>, %18, %cst_15 [1] : vector<8x8xf32> to vector<8xf32>
    %20 = vector.shape_cast %19 : vector<8xf32> to vector<8x1xf32>
    %21 = vector.extract_strided_slice %17 {offsets = [0, 8], sizes = [8, 8], strides = [1, 1]} : vector<8x32xf32> to vector<8x8xf32>
    %cst_16 = arith.constant dense<0xFF800000> : vector<8xf32>
    %22 = vector.multi_reduction <maximumf>, %21, %cst_16 [1] : vector<8x8xf32> to vector<8xf32>
    %23 = vector.shape_cast %22 : vector<8xf32> to vector<8x1xf32>
    %24 = vector.extract_strided_slice %17 {offsets = [0, 16], sizes = [8, 8], strides = [1, 1]} : vector<8x32xf32> to vector<8x8xf32>
    %cst_17 = arith.constant dense<0xFF800000> : vector<8xf32>
    %25 = vector.multi_reduction <maximumf>, %24, %cst_17 [1] : vector<8x8xf32> to vector<8xf32>
    %26 = vector.shape_cast %25 : vector<8xf32> to vector<8x1xf32>
    %27 = vector.extract_strided_slice %17 {offsets = [0, 24], sizes = [8, 8], strides = [1, 1]} : vector<8x32xf32> to vector<8x8xf32>
    %cst_18 = arith.constant dense<0xFF800000> : vector<8xf32>
    %28 = vector.multi_reduction <maximumf>, %27, %cst_18 [1] : vector<8x8xf32> to vector<8xf32>
    %29 = vector.shape_cast %28 : vector<8xf32> to vector<8x1xf32>
    %30 = tpu.concatenate %20, %23, %26, %29 in 1 : vector<8x1xf32>, vector<8x1xf32>, vector<8x1xf32>, vector<8x1xf32> -> vector<8x4xf32>
    %c0_19 = arith.constant 0 : index
    %c0_20 = arith.constant 0 : index
    %31 = vector.load %arg8[%c0_19, %c0_20] : memref<4x32xf32, #tpu.memory_space<vmem>>, vector<4x32xf32>
    %cst_21 = arith.constant dense<0.000000e+00> : vector<8x32xf32>
    %32 = tpu.matmul %30, %31, %cst_21 {dimension_numbers = #tpu.dot_dimension_numbers<[1], [0], [0], [1], [0, 0, 1, 1], [], []>} : vector<8x4xf32>, vector<4x32xf32>, vector<8x32xf32> -> vector<8x32xf32>
    %33 = arith.subf %17, %32 : vector<8x32xf32>
    %34 = math.exp %33 : vector<8x32xf32>
    %c0_22 = arith.constant 0 : index
    %c0_23 = arith.constant 0 : index
    %35 = vector.load %arg9[%c0_22, %c0_23] : memref<32x32xf32, #tpu.memory_space<vmem>>, vector<32x32xf32>
    %cst_24 = arith.constant dense<0.000000e+00> : vector<8x32xf32>
    %36 = tpu.matmul %34, %35, %cst_24 {dimension_numbers = #tpu.dot_dimension_numbers<[1], [0], [0], [1], [0, 0, 1, 1], [], []>} : vector<8x32xf32>, vector<32x32xf32>, vector<8x32xf32> -> vector<8x32xf32>
    %37 = tpu.reciprocal %36 {approx = true} : vector<8x32xf32> -> vector<8x32xf32>
    %38 = arith.mulf %36, %37 : vector<8x32xf32>
    %cst_25 = arith.constant 2.000000e+00 : f32
    %39 = vector.broadcast %cst_25 : f32 to vector<8x32xf32>
    %40 = arith.subf %39, %38 : vector<8x32xf32>
    %41 = arith.mulf %37, %40 : vector<8x32xf32>
    %42 = arith.mulf %34, %41 : vector<8x32xf32>
    %c0_26 = arith.constant 0 : index
    %c0_27 = arith.constant 0 : index
    %43 = vector.load %arg10[%c0_26, %c0_27] : memref<32x8xf32, #tpu.memory_space<vmem>>, vector<32x8xf32>
    %cst_28 = arith.constant dense<0.000000e+00> : vector<8x8xf32>
    %44 = tpu.matmul %42, %43, %cst_28 {dimension_numbers = #tpu.dot_dimension_numbers<[1], [0], [0], [1], [0, 0, 1, 1], [], []>} : vector<8x32xf32>, vector<32x8xf32>, vector<8x8xf32> -> vector<8x8xf32>
    %c0_29 = arith.constant 0 : index
    %c0_30 = arith.constant 0 : index
    %45 = vector.load %arg13[%c0_29, %c0_30] : memref<8x8xf32, #tpu.memory_space<vmem>>, vector<8x8xf32>
    tpu.vector_store %arg13[%c0_29, %c0_30], %44 {strides = array<i32>} : memref<8x8xf32, #tpu.memory_space<vmem>>, vector<8x8xf32>,
    %c0_31 = arith.constant 0 : index
    %c0_32 = arith.constant 0 : index
    %46 = vector.load %arg11[%c0_31, %c0_32] : memref<32x256xf32, #tpu.memory_space<vmem>>, vector<32x256xf32>
    %cst_33 = arith.constant dense<0.000000e+00> : vector<8x256xf32>
    %47 = tpu.matmul %42, %46, %cst_33 {dimension_numbers = #tpu.dot_dimension_numbers<[1], [0], [0], [1], [0, 0, 1, 1], [], []>} : vector<8x32xf32>, vector<32x256xf32>, vector<8x256xf32> -> vector<8x256xf32>
    %48 = arith.mulf %47, %10 : vector<8x256xf32>
    %c0_34 = arith.constant 0 : index
    %c0_35 = arith.constant 0 : index
    %49 = vector.load %arg5[%c0_34, %c0_35] : memref<256x32xf32, #tpu.memory_space<vmem>>, vector<256x32xf32>
    %cst_36 = arith.constant dense<0.000000e+00> : vector<8x32xf32>
    %50 = tpu.matmul %48, %49, %cst_36 {dimension_numbers = #tpu.dot_dimension_numbers<[1], [0], [0], [1], [0, 0, 1, 1], [], []>} : vector<8x256xf32>, vector<256x32xf32>, vector<8x32xf32> -> vector<8x32xf32>
    %51 = vector.broadcast %4 : vector<1x32xf32> to vector<8x32xf32>
    %52 = arith.addf %50, %51 : vector<8x32xf32>
    %c0_37 = arith.constant 0 : index
    %c0_38 = arith.constant 0 : index
    %53 = vector.load %arg12[%c0_37, %c0_38] : memref<8x32xf32, #tpu.memory_space<vmem>>, vector<8x32xf32>
    tpu.vector_store %arg12[%c0_37, %c0_38], %52 {strides = array<i32>} : memref<8x32xf32, #tpu.memory_space<vmem>>, vector<8x32xf32>,
    return
  }
  func.func @transform_0(%arg0: i32) -> (i32, i32) {
    %c0_i32 = arith.constant 0 : i32
    %c0_i32_0 = arith.constant 0 : i32
    return %arg0, %c0_i32 : i32, i32
  }
  func.func @transform_1(%arg0: i32) -> (i32, i32) {
    %c0_i32 = arith.constant 0 : i32
    %c0_i32_0 = arith.constant 0 : i32
    return %arg0, %c0_i32 : i32, i32
  }
  func.func @transform_2(%arg0: i32) -> (i32, i32) {
    %c0_i32 = arith.constant 0 : i32
    %c0_i32_0 = arith.constant 0 : i32
    %c0_i32_1 = arith.constant 0 : i32
    return %c0_i32, %c0_i32_0 : i32, i32
  }
  func.func @transform_3(%arg0: i32) -> (i32, i32) {
    %c0_i32 = arith.constant 0 : i32
    %c0_i32_0 = arith.constant 0 : i32
    %c0_i32_1 = arith.constant 0 : i32
    return %c0_i32, %c0_i32_0 : i32, i32
  }
  func.func @transform_4(%arg0: i32) -> (i32, i32) {
    %c0_i32 = arith.constant 0 : i32
    %c0_i32_0 = arith.constant 0 : i32
    %c0_i32_1 = arith.constant 0 : i32
    return %c0_i32, %c0_i32_0 : i32, i32
  }
  func.func @transform_5(%arg0: i32) -> (i32, i32) {
    %c0_i32 = arith.constant 0 : i32
    %c0_i32_0 = arith.constant 0 : i32
    %c0_i32_1 = arith.constant 0 : i32
    return %c0_i32, %c0_i32_0 : i32, i32
  }
  func.func @transform_6(%arg0: i32) -> (i32, i32) {
    %c0_i32 = arith.constant 0 : i32
    %c0_i32_0 = arith.constant 0 : i32
    %c0_i32_1 = arith.constant 0 : i32
    return %c0_i32, %c0_i32_0 : i32, i32
  }
  func.func @transform_7(%arg0: i32) -> (i32, i32) {
    %c0_i32 = arith.constant 0 : i32
    %c0_i32_0 = arith.constant 0 : i32
    %c0_i32_1 = arith.constant 0 : i32
    return %c0_i32, %c0_i32_0 : i32, i32
  }
  func.func @transform_8(%arg0: i32) -> (i32, i32) {
    %c0_i32 = arith.constant 0 : i32
    %c0_i32_0 = arith.constant 0 : i32
    %c0_i32_1 = arith.constant 0 : i32
    return %c0_i32, %c0_i32_0 : i32, i32
  }
  func.func @transform_9(%arg0: i32) -> (i32, i32) {
    %c0_i32 = arith.constant 0 : i32
    %c0_i32_0 = arith.constant 0 : i32
    %c0_i32_1 = arith.constant 0 : i32
    return %c0_i32, %c0_i32_0 : i32, i32
  }
  func.func @transform_10(%arg0: i32) -> (i32, i32) {
    %c0_i32 = arith.constant 0 : i32
    %c0_i32_0 = arith.constant 0 : i32
    %c0_i32_1 = arith.constant 0 : i32
    return %c0_i32, %c0_i32_0 : i32, i32
  }
  func.func @transform_11(%arg0: i32) -> (i32, i32) {
    %c0_i32 = arith.constant 0 : i32
    %c0_i32_0 = arith.constant 0 : i32
    return %arg0, %c0_i32 : i32, i32
  }
  func.func @transform_12(%arg0: i32) -> (i32, i32) {
    %c0_i32 = arith.constant 0 : i32
    %c0_i32_0 = arith.constant 0 : i32
    return %arg0, %c0_i32 : i32, i32
  }
}

</mosaic_0001>

<llo_original>
// kernel: tpu_custom_call.1
$region0: #{tpu_custom_call.1}
  #allocation0 [shape = 'u32[]', space=smem, size = 0x4, offset = 0x4, fixed_abs, tag = 'smem constant byte address 0x4 - core index']
  #allocation1 [shape = 'u32[144,128]{1,0:T(1,128)}', space=vmem, size = 0x12000, scoped, tag = 'internal scratch']
  %s0 = inlined_call_operand.hbm [shape: f32[8,128], index: 0, kind: input, shape index: {}]
  %s1 = inlined_call_operand.vmem [shape: f32[8,4], index: 1, kind: input, shape index: {}]
  %s2 = inlined_call_operand.hbm [shape: f32[4,256], index: 2, kind: input, shape index: {}]
  %s3 = inlined_call_operand.vmem [shape: f32[128,512], index: 3, kind: input, shape index: {}]
  %s4 = inlined_call_operand.vmem [shape: f32[256,32], index: 4, kind: input, shape index: {}]
  %s5 = inlined_call_operand.hbm [shape: f32[8,512], index: 5, kind: input, shape index: {}]
  %s6 = inlined_call_operand.vmem [shape: f32[256,32], index: 6, kind: input, shape index: {}]
  %s7 = inlined_call_operand.hbm [shape: f32[4,32], index: 7, kind: input, shape index: {}]
  %s8 = inlined_call_operand.hbm [shape: f32[32,32], index: 8, kind: input, shape index: {}]
  %s9 = inlined_call_operand.vmem [shape: f32[32,8], index: 9, kind: input, shape index: {}]
  %s10 = inlined_call_operand.vmem [shape: f32[32,256], index: 10, kind: input, shape index: {}]
  %s11 = inlined_call_operand.hbm [shape: f32[8,32], index: 11, kind: output, shape index: {0}]
  %s12 = inlined_call_operand.hbm [shape: f32[8,8], index: 12, kind: output, shape index: {1}]
  %13 = xla_tuple %s11, %s12
  %s14 = sld [smem:[#allocation0]]
  $region82: #{tpu_custom_call.1} parent=0
    _
  %s16 = ssub.s32 1, %s14
  %s17 = scalar_select 0, %s16, %s14
  $region1: #{tpu_custom_call.1} parent=0
    #allocation2 [shape = 'u8[4096]{0}', space=vmem, size = 0x1000, scoped, tag = 'input window, operand 0, single buffered']
    #allocation3 [shape = 's32[1]{0}', space=sflag, size = 0x4, scoped, tag = 'scoped memory for tpu_custom_call.1']
    #allocation4 [shape = 's32[1]{0}', space=sflag, size = 0x4, scoped, tag = 'scoped memory for tpu_custom_call.1']
    #allocation5 [shape = 'u8[4096]{0}', space=vmem, size = 0x1000, scoped, tag = 'input window, operand 2, single buffered']
    #allocation6 [shape = 's32[1]{0}', space=sflag, size = 0x4, scoped, tag = 'scoped memory for tpu_custom_call.1']
    #allocation7 [shape = 'u8[16384]{0}', space=vmem, size = 0x4000, scoped, tag = 'input window, operand 5, single buffered']
    #allocation8 [shape = 'u8[2048]{0}', space=vmem, size = 0x800, scoped, tag = 'input window, operand 7, single buffered']
    #allocation9 [shape = 's32[1]{0}', space=sflag, size = 0x4, scoped, tag = 'scoped memory for tpu_custom_call.1']
    #allocation10 [shape = 'u8[16384]{0}', space=vmem, size = 0x4000, scoped, tag = 'input window, operand 8, single buffered']
    #allocation11 [shape = 'u8[4096]{0}', space=vmem, size = 0x1000, scoped, tag = 'output window, operand 0, single buffered']
    #allocation12 [shape = 'u8[4096]{0}', space=vmem, size = 0x1000, scoped, tag = 'output window, operand 1, single buffered']
    #allocation13 [shape = 's32[1]{0}', space=sflag, size = 0x4, scoped, tag = 'scoped memory for tpu_custom_call.1']
    %18 = vsyncpa [#allocation3], 0
    %19 = vsyncpa [#allocation6], 0
    %20 = vsyncpa [#allocation9], 0
    %21 = vsyncpa [#allocation4], 0
    %22 = vsyncpa [#allocation13], 0
    // Predicated region
    $region2: #{tpu_custom_call.1} parent=1 // pred_check
      _
    $region3: #{tpu_custom_call.1} parent=1 // pred_check_branch
      %24 = sbr.rel (0) target = $region5
    $region4: #{tpu_custom_call.1} parent=1 // pred_region
      %s26 = ssub.s32 128, 128
      %27 = vsyncadd [#allocation3], %s26
      %s29 = sshll.u32 [#allocation2], 4
      %s30 = int_to_ptr.vmem [resolvable:$true] %s29
      %32 = dma.hbm_to_vmem [thread:$0]  %s0, 128, %s30, [#allocation3]
    $region5: #{tpu_custom_call.1} parent=1 // pred_fallthru
      _
    // Predicated region
    $region6: #{tpu_custom_call.1} parent=1 // pred_check
      _
    $region7: #{tpu_custom_call.1} parent=1 // pred_check_branch
      %34 = sbr.rel (0) target = $region9
    $region8: #{tpu_custom_call.1} parent=1 // pred_region
      _
    $region9: #{tpu_custom_call.1} parent=1 // pred_fallthru
      _
    // Predicated region
    $region10: #{tpu_custom_call.1} parent=1 // pred_check
      _
    $region11: #{tpu_custom_call.1} parent=1 // pred_check_branch
      %36 = sbr.rel (0) target = $region13
    $region12: #{tpu_custom_call.1} parent=1 // pred_region
      %s38 = ssub.s32 128, 128
      %39 = vsyncadd [#allocation6], %s38
      %s41 = sshll.u32 [#allocation5], 4
      %s42 = int_to_ptr.vmem [resolvable:$true] %s41
      %44 = dma.hbm_to_vmem [thread:$0]  %s2, 128, %s42, [#allocation6]
    $region13: #{tpu_custom_call.1} parent=1 // pred_fallthru
      _
    // Predicated region
    $region14: #{tpu_custom_call.1} parent=1 // pred_check
      _
    $region15: #{tpu_custom_call.1} parent=1 // pred_check_branch
      %46 = sbr.rel (0) target = $region17
    $region16: #{tpu_custom_call.1} parent=1 // pred_region
      _
    $region17: #{tpu_custom_call.1} parent=1 // pred_fallthru
      _
    // Predicated region
    $region18: #{tpu_custom_call.1} parent=1 // pred_check
      _
    $region19: #{tpu_custom_call.1} parent=1 // pred_check_branch
      %48 = sbr.rel (0) target = $region21
    $region20: #{tpu_custom_call.1} parent=1 // pred_region
      _
    $region21: #{tpu_custom_call.1} parent=1 // pred_fallthru
      _
    // Predicated region
    $region22: #{tpu_custom_call.1} parent=1 // pred_check
      _
    $region23: #{tpu_custom_call.1} parent=1 // pred_check_branch
      %50 = sbr.rel (0) target = $region25
    $region24: #{tpu_custom_call.1} parent=1 // pred_region
      %s52 = ssub.s32 512, 512
      %53 = vsyncadd [#allocation6], %s52
      %s55 = sshll.u32 [#allocation7], 4
      %s56 = int_to_ptr.vmem [resolvable:$true] %s55
      %58 = dma.hbm_to_vmem [thread:$0]  %s5, 512, %s56, [#allocation6]
    $region25: #{tpu_custom_call.1} parent=1 // pred_fallthru
      _
    // Predicated region
    $region26: #{tpu_custom_call.1} parent=1 // pred_check
      _
    $region27: #{tpu_custom_call.1} parent=1 // pred_check_branch
      %60 = sbr.rel (0) target = $region29
    $region28: #{tpu_custom_call.1} parent=1 // pred_region
      _
    $region29: #{tpu_custom_call.1} parent=1 // pred_fallthru
      _
    // Predicated region
    $region30: #{tpu_custom_call.1} parent=1 // pred_check
      _
    $region31: #{tpu_custom_call.1} parent=1 // pred_check_branch
      %62 = sbr.rel (0) target = $region33
    $region32: #{tpu_custom_call.1} parent=1 // pred_region
      %s64 = ssub.s32 64, 64
      %65 = vsyncadd [#allocation9], %s64
      %s67 = sshll.u32 [#allocation8], 4
      %s68 = int_to_ptr.vmem [resolvable:$true] %s67
      %70 = dma.hbm_to_vmem [thread:$0]  %s7, 64, %s68, [#allocation9]
    $region33: #{tpu_custom_call.1} parent=1 // pred_fallthru
      _
    // Predicated region
    $region34: #{tpu_custom_call.1} parent=1 // pred_check
      _
    $region35: #{tpu_custom_call.1} parent=1 // pred_check_branch
      %72 = sbr.rel (0) target = $region37
    $region36: #{tpu_custom_call.1} parent=1 // pred_region
      %s74 = ssub.s32 512, 512
      %75 = vsyncadd [#allocation9], %s74
      %s76 = sshll.u32 [#allocation10], 4
      %s77 = int_to_ptr.vmem [resolvable:$true] %s76
      %82 = dma.hbm_to_vmem [thread:$0]  %s8, 512, %s77, [#allocation9], 128, 128, 8
    $region37: #{tpu_custom_call.1} parent=1 // pred_fallthru
      _
    // Predicated region
    $region38: #{tpu_custom_call.1} parent=1 // pred_check
      _
    $region39: #{tpu_custom_call.1} parent=1 // pred_check_branch
      %84 = sbr.rel (0) target = $region41
    $region40: #{tpu_custom_call.1} parent=1 // pred_region
      _
    $region41: #{tpu_custom_call.1} parent=1 // pred_fallthru
      _
    // Predicated region
    $region42: #{tpu_custom_call.1} parent=1 // pred_check
      _
    $region43: #{tpu_custom_call.1} parent=1 // pred_check_branch
      %86 = sbr.rel (0) target = $region45
    $region44: #{tpu_custom_call.1} parent=1 // pred_region
      _
    $region45: #{tpu_custom_call.1} parent=1 // pred_fallthru
      _
    // Predicated region
    $region46: #{tpu_custom_call.1} parent=1 // pred_check
      _
    $region47: #{tpu_custom_call.1} parent=1 // pred_check_branch
      %88 = sbr.rel (0) target = $region49
    $region48: #{tpu_custom_call.1} parent=1 // pred_region
      %89 = dma.done [#allocation3], 128
    $region49: #{tpu_custom_call.1} parent=1 // pred_fallthru
      _
    // Predicated region
    $region50: #{tpu_custom_call.1} parent=1 // pred_check
      _
    $region51: #{tpu_custom_call.1} parent=1 // pred_check_branch
      %91 = sbr.rel (0) target = $region53
    $region52: #{tpu_custom_call.1} parent=1 // pred_region
      %92 = dma.done [#allocation6], 128
    $region53: #{tpu_custom_call.1} parent=1 // pred_fallthru
      _
    // Predicated region
    $region54: #{tpu_custom_call.1} parent=1 // pred_check
      _
    $region55: #{tpu_custom_call.1} parent=1 // pred_check_branch
      %94 = sbr.rel (0) target = $region57
    $region56: #{tpu_custom_call.1} parent=1 // pred_region
      %95 = dma.done [#allocation6], 512
    $region57: #{tpu_custom_call.1} parent=1 // pred_fallthru
      _
    // Predicated region
    $region58: #{tpu_custom_call.1} parent=1 // pred_check
      _
    $region59: #{tpu_custom_call.1} parent=1 // pred_check_branch
      %97 = sbr.rel (0) target = $region61
    $region60: #{tpu_custom_call.1} parent=1 // pred_region
      %98 = dma.done [#allocation9], 64
    $region61: #{tpu_custom_call.1} parent=1 // pred_fallthru
      _
    // Predicated region
    $region62: #{tpu_custom_call.1} parent=1 // pred_check
      _
    $region63: #{tpu_custom_call.1} parent=1 // pred_check_branch
      %100 = sbr.rel (0) target = $region65
    $region64: #{tpu_custom_call.1} parent=1 // pred_region
      %101 = dma.done [#allocation9], 512
    $region65: #{tpu_custom_call.1} parent=1 // pred_fallthru
      _
    %v102 = vld [vmem:[#allocation2] sm:$0xff]
    %v103 = vld [vmem:[%s1] sm:$0xff]
    %v104 = vld [vmem:[#allocation7] ss:$8 sm:$0xf]
    %s105 = scalar_lea.vmem [#allocation7], 1
    %v106 = vld [vmem:[%s105] ss:$8 sm:$0x3]
    %v107 = vld [vmem:[#allocation7 + $0x2] ss:$0 sm:$0xff]
    %v108 = vld [vmem:[%s3] sm:$0xff]
    %v109 = vld [vmem:[%s3 + $0x8] sm:$0xff]
    %v110 = vld [vmem:[%s3 + $0x10] sm:$0xff]
    %v111 = vld [vmem:[%s3 + $0x18] sm:$0xff]
    %v112 = vld [vmem:[%s3 + $0x20] sm:$0xff]
    %v113 = vld [vmem:[%s3 + $0x28] sm:$0xff]
    %v114 = vld [vmem:[%s3 + $0x30] sm:$0xff]
    %v115 = vld [vmem:[%s3 + $0x38] sm:$0xff]
    %v116 = vld [vmem:[%s3 + $0x40] sm:$0xff]
    %v117 = vld [vmem:[%s3 + $0x48] sm:$0xff]
    %v118 = vld [vmem:[%s3 + $0x50] sm:$0xff]
    %v119 = vld [vmem:[%s3 + $0x58] sm:$0xff]
    %v120 = vld [vmem:[%s3 + $0x60] sm:$0xff]
    %v121 = vld [vmem:[%s3 + $0x68] sm:$0xff]
    %v122 = vld [vmem:[%s3 + $0x70] sm:$0xff]
    %v123 = vld [vmem:[%s3 + $0x78] sm:$0xff]
    %v124 = vld [vmem:[%s3 + $0x80] sm:$0xff]
    %v125 = vld [vmem:[%s3 + $0x88] sm:$0xff]
    %v126 = vld [vmem:[%s3 + $0x90] sm:$0xff]
    %v127 = vld [vmem:[%s3 + $0x98] sm:$0xff]
    %v128 = vld [vmem:[%s3 + $0xa0] sm:$0xff]
    %v129 = vld [vmem:[%s3 + $0xa8] sm:$0xff]
    %v130 = vld [vmem:[%s3 + $0xb0] sm:$0xff]
    %v131 = vld [vmem:[%s3 + $0xb8] sm:$0xff]
    %v132 = vld [vmem:[%s3 + $0xc0] sm:$0xff]
    %v133 = vld [vmem:[%s3 + $0xc8] sm:$0xff]
    %v134 = vld [vmem:[%s3 + $0xd0] sm:$0xff]
    %v135 = vld [vmem:[%s3 + $0xd8] sm:$0xff]
    %v136 = vld [vmem:[%s3 + $0xe0] sm:$0xff]
    %v137 = vld [vmem:[%s3 + $0xe8] sm:$0xff]
    %v138 = vld [vmem:[%s3 + $0xf0] sm:$0xff]
    %v139 = vld [vmem:[%s3 + $0xf8] sm:$0xff]
    %v140 = vld [vmem:[%s3 + $0x100] sm:$0xff]
    %v141 = vld [vmem:[%s3 + $0x108] sm:$0xff]
    %v142 = vld [vmem:[%s3 + $0x110] sm:$0xff]
    %v143 = vld [vmem:[%s3 + $0x118] sm:$0xff]
    %v144 = vld [vmem:[%s3 + $0x120] sm:$0xff]
    %v145 = vld [vmem:[%s3 + $0x128] sm:$0xff]
    %v146 = vld [vmem:[%s3 + $0x130] sm:$0xff]
    %v147 = vld [vmem:[%s3 + $0x138] sm:$0xff]
    %v148 = vld [vmem:[%s3 + $0x140] sm:$0xff]
    %v149 = vld [vmem:[%s3 + $0x148] sm:$0xff]
    %v150 = vld [vmem:[%s3 + $0x150] sm:$0xff]
    %v151 = vld [vmem:[%s3 + $0x158] sm:$0xff]
    %v152 = vld [vmem:[%s3 + $0x160] sm:$0xff]
    %v153 = vld [vmem:[%s3 + $0x168] sm:$0xff]
    %v154 = vld [vmem:[%s3 + $0x170] sm:$0xff]
    %v155 = vld [vmem:[%s3 + $0x178] sm:$0xff]
    %v156 = vld [vmem:[%s3 + $0x180] sm:$0xff]
    %v157 = vld [vmem:[%s3 + $0x188] sm:$0xff]
    %v158 = vld [vmem:[%s3 + $0x190] sm:$0xff]
    %v159 = vld [vmem:[%s3 + $0x198] sm:$0xff]
    %v160 = vld [vmem:[%s3 + $0x1a0] sm:$0xff]
    %v161 = vld [vmem:[%s3 + $0x1a8] sm:$0xff]
    %v162 = vld [vmem:[%s3 + $0x1b0] sm:$0xff]
    %v163 = vld [vmem:[%s3 + $0x1b8] sm:$0xff]
    %v164 = vld [vmem:[%s3 + $0x1c0] sm:$0xff]
    %v165 = vld [vmem:[%s3 + $0x1c8] sm:$0xff]
    %v166 = vld [vmem:[%s3 + $0x1d0] sm:$0xff]
    %v167 = vld [vmem:[%s3 + $0x1d8] sm:$0xff]
    %v168 = vld [vmem:[%s3 + $0x1e0] sm:$0xff]
    %v169 = vld [vmem:[%s3 + $0x1e8] sm:$0xff]
    %v170 = vld [vmem:[%s3 + $0x1f0] sm:$0xff]
    %v171 = vld [vmem:[%s3 + $0x1f8] sm:$0xff]
    %v173 = vlaneseq
    %v174 = vshrl.u32 %v173, 7
    %v175 = vsub.s32 0, %v174
    %v176 = vrot.slane %v104, %v175
    %v177 = vlaneseq
    %v178 = vshrl.u32 %v177, 7
    %v179 = vsub.s32 1, %v178
    %v180 = vrot.slane %v104, %v179
    %v181 = vlaneseq
    %v182 = vshrl.u32 %v181, 7
    %v183 = vsub.s32 2, %v182
    %v184 = vrot.slane %v104, %v183
    %v185 = vlaneseq
    %v186 = vshrl.u32 %v185, 7
    %v187 = vsub.s32 3, %v186
    %v188 = vrot.slane %v104, %v187
    %193 = vmatprep.subr.mxu0 %v109
    %194 = vmatpush1.msra.mxu0 %v108
    %195 = vmatprep.subr.mxu0 %v113
    %196 = vmatpush1.msra.mxu0 %v112
    %197 = vmatprep.subr.mxu0 %v117
    %198 = vmatpush1.msra.mxu0 %v116
    %199 = vmatprep.subr.mxu0 %v121
    %200 = vmatpush1.msra.mxu0 %v120
    %201 = vmatprep.subr.mxu0 %v125
    %202 = vmatpush1.msra.mxu0 %v124
    %203 = vmatprep.subr.mxu0 %v129
    %204 = vmatpush1.msra.mxu0 %v128
    %205 = vmatprep.subr.mxu0 %v133
    %206 = vmatpush1.msra.mxu0 %v132
    %207 = vmatprep.subr.mxu0 %v137
    %208 = vmatpush1.msra.mxu0 %v136
    %209 = vmatprep.subr.mxu0 %v141
    %210 = vmatpush1.msra.mxu0 %v140
    %211 = vmatprep.subr.mxu0 %v145
    %212 = vmatpush1.msra.mxu0 %v144
    %213 = vmatprep.subr.mxu0 %v149
    %214 = vmatpush1.msra.mxu0 %v148
    %215 = vmatprep.subr.mxu0 %v153
    %216 = vmatpush1.msra.mxu0 %v152
    %217 = vmatprep.subr.mxu0 %v157
    %218 = vmatpush1.msra.mxu0 %v156
    %219 = vmatprep.subr.mxu0 %v161
    %220 = vmatpush1.msra.mxu0 %v160
    %221 = vmatprep.subr.mxu0 %v165
    %222 = vmatpush1.msra.mxu0 %v164
    %223 = vmatprep.subr.mxu0 %v169
    %224 = vmatpush1.msra.mxu0 %v168
    %225 = vmatprep.subr.mxu0 0.0
    %226 = vmatpush1.msra.mxu0 0.0
    %227 = vmatprep.subr.mxu0 0.0
    %228 = vmatpush1.msra.mxu0 0.0
    %229 = vmatprep.subr.mxu0 0.0
    %230 = vmatpush1.msra.mxu0 0.0
    %231 = vmatprep.subr.mxu0 0.0
    %232 = vmatpush1.msra.mxu0 0.0
    %233 = vmatprep.subr.mxu0 0.0
    %234 = vmatpush1.msra.mxu0 0.0
    %235 = vmatprep.subr.mxu0 0.0
    %236 = vmatpush1.msra.mxu0 0.0
    %237 = vmatprep.subr.mxu0 0.0
    %238 = vmatpush1.msra.mxu0 0.0
    %239 = vmatprep.subr.mxu0 0.0
    %240 = vmatpush1.msra.mxu0 0.0
    %241 = vmatprep.subr.mxu0 0.0
    %242 = vmatpush1.msra.mxu0 0.0
    %243 = vmatprep.subr.mxu0 0.0
    %244 = vmatpush1.msra.mxu0 0.0
    %245 = vmatprep.subr.mxu0 0.0
    %246 = vmatpush1.msra.mxu0 0.0
    %247 = vmatprep.subr.mxu0 0.0
    %248 = vmatpush1.msra.mxu0 0.0
    %249 = vmatprep.subr.mxu0 0.0
    %250 = vmatpush1.msra.mxu0 0.0
    %251 = vmatprep.subr.mxu0 0.0
    %252 = vmatpush1.msra.mxu0 0.0
    %253 = vmatprep.subr.mxu0 0.0
    %254 = vmatpush1.msra.mxu0 0.0
    %255 = vmatprep.subr.mxu0 0.0
    %256 = vmatpush1.msra.mxu0 0.0
    %257 = vmatprep.mubr.f32.mxu0 0.0
    %258 = vmatmul.mubr.f32.gmra.mrb[0].mxu0 %v102
    %v259 = vpop.f32.mrb[0].mxu0
    %v260 = vadd.f32 %v176, %v259
    %v261 = vpop.f32.mrb[0].mxu0
    %v262 = vadd.f32 %v180, %v261
    %263 = vdwg.mxu0
    %264 = vmatprep.subr.mxu0 %v111
    %265 = vmatpush1.msra.mxu0 %v110
    %266 = vmatprep.subr.mxu0 %v115
    %267 = vmatpush1.msra.mxu0 %v114
    %268 = vmatprep.subr.mxu0 %v119
    %269 = vmatpush1.msra.mxu0 %v118
    %270 = vmatprep.subr.mxu0 %v123
    %271 = vmatpush1.msra.mxu0 %v122
    %272 = vmatprep.subr.mxu0 %v127
    %273 = vmatpush1.msra.mxu0 %v126
    %274 = vmatprep.subr.mxu0 %v131
    %275 = vmatpush1.msra.mxu0 %v130
    %276 = vmatprep.subr.mxu0 %v135
    %277 = vmatpush1.msra.mxu0 %v134
    %278 = vmatprep.subr.mxu0 %v139
    %279 = vmatpush1.msra.mxu0 %v138
    %280 = vmatprep.subr.mxu0 %v143
    %281 = vmatpush1.msra.mxu0 %v142
    %282 = vmatprep.subr.mxu0 %v147
    %283 = vmatpush1.msra.mxu0 %v146
    %284 = vmatprep.subr.mxu0 %v151
    %285 = vmatpush1.msra.mxu0 %v150
    %286 = vmatprep.subr.mxu0 %v155
    %287 = vmatpush1.msra.mxu0 %v154
    %288 = vmatprep.subr.mxu0 %v159
    %289 = vmatpush1.msra.mxu0 %v158
    %290 = vmatprep.subr.mxu0 %v163
    %291 = vmatpush1.msra.mxu0 %v162
    %292 = vmatprep.subr.mxu0 %v167
    %293 = vmatpush1.msra.mxu0 %v166
    %294 = vmatprep.subr.mxu0 %v171
    %295 = vmatpush1.msra.mxu0 %v170
    %296 = vmatprep.subr.mxu0 0.0
    %297 = vmatpush1.msra.mxu0 0.0
    %298 = vmatprep.subr.mxu0 0.0
    %299 = vmatpush1.msra.mxu0 0.0
    %300 = vmatprep.subr.mxu0 0.0
    %301 = vmatpush1.msra.mxu0 0.0
    %302 = vmatprep.subr.mxu0 0.0
    %303 = vmatpush1.msra.mxu0 0.0
    %304 = vmatprep.subr.mxu0 0.0
    %305 = vmatpush1.msra.mxu0 0.0
    %306 = vmatprep.subr.mxu0 0.0
    %307 = vmatpush1.msra.mxu0 0.0
    %308 = vmatprep.subr.mxu0 0.0
    %309 = vmatpush1.msra.mxu0 0.0
    %310 = vmatprep.subr.mxu0 0.0
    %311 = vmatpush1.msra.mxu0 0.0
    %312 = vmatprep.subr.mxu0 0.0
    %313 = vmatpush1.msra.mxu0 0.0
    %314 = vmatprep.subr.mxu0 0.0
    %315 = vmatpush1.msra.mxu0 0.0
    %316 = vmatprep.subr.mxu0 0.0
    %317 = vmatpush1.msra.mxu0 0.0
    %318 = vmatprep.subr.mxu0 0.0
    %319 = vmatpush1.msra.mxu0 0.0
    %320 = vmatprep.subr.mxu0 0.0
    %321 = vmatpush1.msra.mxu0 0.0
    %322 = vmatprep.subr.mxu0 0.0
    %323 = vmatpush1.msra.mxu0 0.0
    %324 = vmatprep.subr.mxu0 0.0
    %325 = vmatpush1.msra.mxu0 0.0
    %326 = vmatprep.subr.mxu0 0.0
    %327 = vmatpush1.msra.mxu0 0.0
    %328 = vmatprep.mubr.f32.mxu0 0.0
    %329 = vmatmul.mubr.f32.gmra.mrb[0].mxu0 %v102
    %v330 = vpop.f32.mrb[0].mxu0
    %v331 = vadd.f32 %v184, %v330
    %v332 = vpop.f32.mrb[0].mxu0
    %v333 = vadd.f32 %v188, %v332
    %334 = vdwg.mxu0
    %v335 = vld [vmem:[#allocation5] sm:$0xff]
    %v337 = vlaneseq
    %v338 = vshrl.u32 %v337, 7
    %v339 = vsub.s32 0, %v338
    %v340 = vrot.slane %v106, %v339
    %v341 = vlaneseq
    %v342 = vshrl.u32 %v341, 7
    %v343 = vsub.s32 1, %v342
    %v344 = vrot.slane %v106, %v343
    %v348 = vcombine.high %v335, %v335
    %vm349 = vcmask 31744
    %v351 = vsel %vm349, %v103, 0
    %vm353 = vcmask 1043456
    %v354 = vsel %vm353, %v335, 0
    %v356 = vsel %vm353, %v348, 0
    %358 = vmatprep.subr.mxu0 %v356
    %359 = vmatpush1.msra.mxu0 %v354
    %360 = vmatprep.subr.mxu0 0.0
    %361 = vmatpush1.msra.mxu0 0.0
    %362 = vmatprep.subr.mxu0 0.0
    %363 = vmatpush1.msra.mxu0 0.0
    %364 = vmatprep.subr.mxu0 0.0
    %365 = vmatpush1.msra.mxu0 0.0
    %366 = vmatprep.subr.mxu0 0.0
    %367 = vmatpush1.msra.mxu0 0.0
    %368 = vmatprep.subr.mxu0 0.0
    %369 = vmatpush1.msra.mxu0 0.0
    %370 = vmatprep.subr.mxu0 0.0
    %371 = vmatpush1.msra.mxu0 0.0
    %372 = vmatprep.subr.mxu0 0.0
    %373 = vmatpush1.msra.mxu0 0.0
    %374 = vmatprep.subr.mxu0 0.0
    %375 = vmatpush1.msra.mxu0 0.0
    %376 = vmatprep.subr.mxu0 0.0
    %377 = vmatpush1.msra.mxu0 0.0
    %378 = vmatprep.subr.mxu0 0.0
    %379 = vmatpush1.msra.mxu0 0.0
    %380 = vmatprep.subr.mxu0 0.0
    %381 = vmatpush1.msra.mxu0 0.0
    %382 = vmatprep.subr.mxu0 0.0
    %383 = vmatpush1.msra.mxu0 0.0
    %384 = vmatprep.subr.mxu0 0.0
    %385 = vmatpush1.msra.mxu0 0.0
    %386 = vmatprep.subr.mxu0 0.0
    %387 = vmatpush1.msra.mxu0 0.0
    %388 = vmatprep.subr.mxu0 0.0
    %389 = vmatpush1.msra.mxu0 0.0
    %390 = vmatprep.subr.mxu0 0.0
    %391 = vmatpush1.msra.mxu0 0.0
    %392 = vmatprep.subr.mxu0 0.0
    %393 = vmatpush1.msra.mxu0 0.0
    %394 = vmatprep.subr.mxu0 0.0
    %395 = vmatpush1.msra.mxu0 0.0
    %396 = vmatprep.subr.mxu0 0.0
    %397 = vmatpush1.msra.mxu0 0.0
    %398 = vmatprep.subr.mxu0 0.0
    %399 = vmatpush1.msra.mxu0 0.0
    %400 = vmatprep.subr.mxu0 0.0
    %401 = vmatpush1.msra.mxu0 0.0
    %402 = vmatprep.subr.mxu0 0.0
    %403 = vmatpush1.msra.mxu0 0.0
    %404 = vmatprep.subr.mxu0 0.0
    %405 = vmatpush1.msra.mxu0 0.0
    %406 = vmatprep.subr.mxu0 0.0
    %407 = vmatpush1.msra.mxu0 0.0
    %408 = vmatprep.subr.mxu0 0.0
    %409 = vmatpush1.msra.mxu0 0.0
    %410 = vmatprep.subr.mxu0 0.0
    %411 = vmatpush1.msra.mxu0 0.0
    %412 = vmatprep.subr.mxu0 0.0
    %413 = vmatpush1.msra.mxu0 0.0
    %414 = vmatprep.subr.mxu0 0.0
    %415 = vmatpush1.msra.mxu0 0.0
    %416 = vmatprep.subr.mxu0 0.0
    %417 = vmatpush1.msra.mxu0 0.0
    %418 = vmatprep.subr.mxu0 0.0
    %419 = vmatpush1.msra.mxu0 0.0
    %420 = vmatprep.subr.mxu0 0.0
    %421 = vmatpush1.msra.mxu0 0.0
    %422 = vmatprep.mubr.f32.mxu0 0.0
    %423 = vmatmul.mubr.f32.gmra.mrb[0].mxu0 %v351
    %v424 = vpop.f32.mrb[0].mxu0
    %v425 = vadd.f32 %v340, %v424
    %v426 = vpop.f32.mrb[0].mxu0
    %v427 = vadd.f32 %v344, %v426
    %428 = vdwg.mxu0
    %v429 = vmul.f32 %v260, %v425
    %v430 = vmul.f32 %v262, %v427
    %v431 = vld [vmem:[%s6] sm:$0xff]
    %v432 = vld [vmem:[%s6 + $0x8] sm:$0xff]
    %v433 = vld [vmem:[%s6 + $0x10] sm:$0xff]
    %v434 = vld [vmem:[%s6 + $0x18] sm:$0xff]
    %v435 = vld [vmem:[%s6 + $0x20] sm:$0xff]
    %v436 = vld [vmem:[%s6 + $0x28] sm:$0xff]
    %v437 = vld [vmem:[%s6 + $0x30] sm:$0xff]
    %v438 = vld [vmem:[%s6 + $0x38] sm:$0xff]
    %v439 = vld [vmem:[%s6 + $0x40] sm:$0xff]
    %v440 = vld [vmem:[%s6 + $0x48] sm:$0xff]
    %v441 = vld [vmem:[%s6 + $0x50] sm:$0xff]
    %v442 = vld [vmem:[%s6 + $0x58] sm:$0xff]
    %v443 = vld [vmem:[%s6 + $0x60] sm:$0xff]
    %v444 = vld [vmem:[%s6 + $0x68] sm:$0xff]
    %v445 = vld [vmem:[%s6 + $0x70] sm:$0xff]
    %v446 = vld [vmem:[%s6 + $0x78] sm:$0xff]
    %v447 = vld [vmem:[%s6 + $0x80] sm:$0xff]
    %v448 = vld [vmem:[%s6 + $0x88] sm:$0xff]
    %v449 = vld [vmem:[%s6 + $0x90] sm:$0xff]
    %v450 = vld [vmem:[%s6 + $0x98] sm:$0xff]
    %v451 = vld [vmem:[%s6 + $0xa0] sm:$0xff]
    %v452 = vld [vmem:[%s6 + $0xa8] sm:$0xff]
    %v453 = vld [vmem:[%s6 + $0xb0] sm:$0xff]
    %v454 = vld [vmem:[%s6 + $0xb8] sm:$0xff]
    %v455 = vld [vmem:[%s6 + $0xc0] sm:$0xff]
    %v456 = vld [vmem:[%s6 + $0xc8] sm:$0xff]
    %v457 = vld [vmem:[%s6 + $0xd0] sm:$0xff]
    %v458 = vld [vmem:[%s6 + $0xd8] sm:$0xff]
    %v459 = vld [vmem:[%s6 + $0xe0] sm:$0xff]
    %v460 = vld [vmem:[%s6 + $0xe8] sm:$0xff]
    %v461 = vld [vmem:[%s6 + $0xf0] sm:$0xff]
    %v462 = vld [vmem:[%s6 + $0xf8] sm:$0xff]
    %463 = vmatprep.subr.mxu0 0.0
    %464 = vmatpush1.msra.mxu0 %v431
    %465 = vmatprep.subr.mxu0 0.0
    %466 = vmatpush1.msra.mxu0 %v432
    %467 = vmatprep.subr.mxu0 0.0
    %468 = vmatpush1.msra.mxu0 %v433
    %469 = vmatprep.subr.mxu0 0.0
    %470 = vmatpush1.msra.mxu0 %v434
    %471 = vmatprep.subr.mxu0 0.0
    %472 = vmatpush1.msra.mxu0 %v435
    %473 = vmatprep.subr.mxu0 0.0
    %474 = vmatpush1.msra.mxu0 %v436
    %475 = vmatprep.subr.mxu0 0.0
    %476 = vmatpush1.msra.mxu0 %v437
    %477 = vmatprep.subr.mxu0 0.0
    %478 = vmatpush1.msra.mxu0 %v438
    %479 = vmatprep.subr.mxu0 0.0
    %480 = vmatpush1.msra.mxu0 %v439
    %481 = vmatprep.subr.mxu0 0.0
    %482 = vmatpush1.msra.mxu0 %v440
    %483 = vmatprep.subr.mxu0 0.0
    %484 = vmatpush1.msra.mxu0 %v441
    %485 = vmatprep.subr.mxu0 0.0
    %486 = vmatpush1.msra.mxu0 %v442
    %487 = vmatprep.subr.mxu0 0.0
    %488 = vmatpush1.msra.mxu0 %v443
    %489 = vmatprep.subr.mxu0 0.0
    %490 = vmatpush1.msra.mxu0 %v444
    %491 = vmatprep.subr.mxu0 0.0
    %492 = vmatpush1.msra.mxu0 %v445
    %493 = vmatprep.subr.mxu0 0.0
    %494 = vmatpush1.msra.mxu0 %v446
    %495 = vmatprep.subr.mxu0 0.0
    %496 = vmatpush1.msra.mxu0 %v447
    %497 = vmatprep.subr.mxu0 0.0
    %498 = vmatpush1.msra.mxu0 %v448
    %499 = vmatprep.subr.mxu0 0.0
    %500 = vmatpush1.msra.mxu0 %v449
    %501 = vmatprep.subr.mxu0 0.0
    %502 = vmatpush1.msra.mxu0 %v450
    %503 = vmatprep.subr.mxu0 0.0
    %504 = vmatpush1.msra.mxu0 %v451
    %505 = vmatprep.subr.mxu0 0.0
    %506 = vmatpush1.msra.mxu0 %v452
    %507 = vmatprep.subr.mxu0 0.0
    %508 = vmatpush1.msra.mxu0 %v453
    %509 = vmatprep.subr.mxu0 0.0
    %510 = vmatpush1.msra.mxu0 %v454
    %511 = vmatprep.subr.mxu0 0.0
    %512 = vmatpush1.msra.mxu0 %v455
    %513 = vmatprep.subr.mxu0 0.0
    %514 = vmatpush1.msra.mxu0 %v456
    %515 = vmatprep.subr.mxu0 0.0
    %516 = vmatpush1.msra.mxu0 %v457
    %517 = vmatprep.subr.mxu0 0.0
    %518 = vmatpush1.msra.mxu0 %v458
    %519 = vmatprep.subr.mxu0 0.0
    %520 = vmatpush1.msra.mxu0 %v459
    %521 = vmatprep.subr.mxu0 0.0
    %522 = vmatpush1.msra.mxu0 %v460
    %523 = vmatprep.subr.mxu0 0.0
    %524 = vmatpush1.msra.mxu0 %v461
    %525 = vmatprep.subr.mxu0 0.0
    %526 = vmatpush1.msra.mxu0 %v462
    %527 = vmatprep.mubr.f32.mxu0 %v430
    %528 = vmatmul.mubr.f32.gmra.mrb[0].mxu0 %v429
    %v529 = vpop.f32.mrb[0].mxu0
    %v530 = vadd.f32 0.0, %v529
    %v531 = vpop.f32.mrb[0].mxu0
    %532 = vdwg.mxu0
    %vm533 = vcmask 64512
    %v534 = vsel %vm533, %v530, -inf
    %535 = vmax.xlane.f32.xlu0 %v534
    %v536 = vpop.xlane.xlu0 %535
    %vm537 = vcmask 130112
    %v538 = vsel %vm537, %v530, -inf
    %539 = vmax.xlane.f32.xlu0 %v538
    %v540 = vpop.xlane.xlu0 %539
    %vm541 = vcmask 195712
    %v542 = vsel %vm541, %v530, -inf
    %543 = vmax.xlane.f32.xlu0 %v542
    %v544 = vpop.xlane.xlu0 %543
    %vm545 = vcmask 261312
    %v546 = vsel %vm545, %v530, -inf
    %547 = vmax.xlane.f32.xlu0 %v546
    %v548 = vpop.xlane.xlu0 %547
    %vm549 = vcmask 7168
    %v550 = vsel %vm549, %v536, %v540
    %vm551 = vcmask 15360
    %v552 = vsel %vm551, %v550, %v544
    %vm553 = vcmask 23552
    %v554 = vsel %vm553, %v552, %v548
    %v555 = vld [vmem:[#allocation8] sm:$0xf]
    %v557 = vsel %vm349, %v554, 0
    %v560 = vsel %vm353, %v555, 0
    %562 = vmatprep.subr.mxu0 0.0
    %563 = vmatpush1.msra.mxu0 %v560
    %564 = vmatprep.subr.mxu0 0.0
    %565 = vmatpush1.msra.mxu0 0.0
    %566 = vmatprep.subr.mxu0 0.0
    %567 = vmatpush1.msra.mxu0 0.0
    %568 = vmatprep.subr.mxu0 0.0
    %569 = vmatpush1.msra.mxu0 0.0
    %570 = vmatprep.subr.mxu0 0.0
    %571 = vmatpush1.msra.mxu0 0.0
    %572 = vmatprep.subr.mxu0 0.0
    %573 = vmatpush1.msra.mxu0 0.0
    %574 = vmatprep.subr.mxu0 0.0
    %575 = vmatpush1.msra.mxu0 0.0
    %576 = vmatprep.subr.mxu0 0.0
    %577 = vmatpush1.msra.mxu0 0.0
    %578 = vmatprep.subr.mxu0 0.0
    %579 = vmatpush1.msra.mxu0 0.0
    %580 = vmatprep.subr.mxu0 0.0
    %581 = vmatpush1.msra.mxu0 0.0
    %582 = vmatprep.subr.mxu0 0.0
    %583 = vmatpush1.msra.mxu0 0.0
    %584 = vmatprep.subr.mxu0 0.0
    %585 = vmatpush1.msra.mxu0 0.0
    %586 = vmatprep.subr.mxu0 0.0
    %587 = vmatpush1.msra.mxu0 0.0
    %588 = vmatprep.subr.mxu0 0.0
    %589 = vmatpush1.msra.mxu0 0.0
    %590 = vmatprep.subr.mxu0 0.0
    %591 = vmatpush1.msra.mxu0 0.0
    %592 = vmatprep.subr.mxu0 0.0
    %593 = vmatpush1.msra.mxu0 0.0
    %594 = vmatprep.subr.mxu0 0.0
    %595 = vmatpush1.msra.mxu0 0.0
    %596 = vmatprep.subr.mxu0 0.0
    %597 = vmatpush1.msra.mxu0 0.0
    %598 = vmatprep.subr.mxu0 0.0
    %599 = vmatpush1.msra.mxu0 0.0
    %600 = vmatprep.subr.mxu0 0.0
    %601 = vmatpush1.msra.mxu0 0.0
    %602 = vmatprep.subr.mxu0 0.0
    %603 = vmatpush1.msra.mxu0 0.0
    %604 = vmatprep.subr.mxu0 0.0
    %605 = vmatpush1.msra.mxu0 0.0
    %606 = vmatprep.subr.mxu0 0.0
    %607 = vmatpush1.msra.mxu0 0.0
    %608 = vmatprep.subr.mxu0 0.0
    %609 = vmatpush1.msra.mxu0 0.0
    %610 = vmatprep.subr.mxu0 0.0
    %611 = vmatpush1.msra.mxu0 0.0
    %612 = vmatprep.subr.mxu0 0.0
    %613 = vmatpush1.msra.mxu0 0.0
    %614 = vmatprep.subr.mxu0 0.0
    %615 = vmatpush1.msra.mxu0 0.0
    %616 = vmatprep.subr.mxu0 0.0
    %617 = vmatpush1.msra.mxu0 0.0
    %618 = vmatprep.subr.mxu0 0.0
    %619 = vmatpush1.msra.mxu0 0.0
    %620 = vmatprep.subr.mxu0 0.0
    %621 = vmatpush1.msra.mxu0 0.0
    %622 = vmatprep.subr.mxu0 0.0
    %623 = vmatpush1.msra.mxu0 0.0
    %624 = vmatprep.subr.mxu0 0.0
    %625 = vmatpush1.msra.mxu0 0.0
    %626 = vmatprep.mubr.f32.mxu0 0.0
    %627 = vmatmul.mubr.f32.gmra.mrb[0].mxu0 %v557
    %v628 = vpop.f32.mrb[0].mxu0
    %v629 = vadd.f32 0.0, %v628
    %v630 = vpop.f32.mrb[0].mxu0
    %631 = vdwg.mxu0
    %v632 = vsub.f32 %v530, %v629
    %v633 = vmul.f32 %v632, 1.442695
    %v634 = vpow.pop %v633
    %v635 = vld [vmem:[#allocation10] sm:$0xff]
    %v636 = vld [vmem:[#allocation10 + $0x8] sm:$0xff]
    %v637 = vld [vmem:[#allocation10 + $0x10] sm:$0xff]
    %v638 = vld [vmem:[#allocation10 + $0x18] sm:$0xff]
    %vm639 = vcmask 261120
    %v641 = vsel %vm639, %v634, 0
    %643 = vmatprep.subr.mxu0 0.0
    %644 = vmatpush1.msra.mxu0 %v635
    %645 = vmatprep.subr.mxu0 0.0
    %646 = vmatpush1.msra.mxu0 %v636
    %647 = vmatprep.subr.mxu0 0.0
    %648 = vmatpush1.msra.mxu0 %v637
    %649 = vmatprep.subr.mxu0 0.0
    %650 = vmatpush1.msra.mxu0 %v638
    %651 = vmatprep.subr.mxu0 0.0
    %652 = vmatpush1.msra.mxu0 0.0
    %653 = vmatprep.subr.mxu0 0.0
    %654 = vmatpush1.msra.mxu0 0.0
    %655 = vmatprep.subr.mxu0 0.0
    %656 = vmatpush1.msra.mxu0 0.0
    %657 = vmatprep.subr.mxu0 0.0
    %658 = vmatpush1.msra.mxu0 0.0
    %659 = vmatprep.subr.mxu0 0.0
    %660 = vmatpush1.msra.mxu0 0.0
    %661 = vmatprep.subr.mxu0 0.0
    %662 = vmatpush1.msra.mxu0 0.0
    %663 = vmatprep.subr.mxu0 0.0
    %664 = vmatpush1.msra.mxu0 0.0
    %665 = vmatprep.subr.mxu0 0.0
    %666 = vmatpush1.msra.mxu0 0.0
    %667 = vmatprep.subr.mxu0 0.0
    %668 = vmatpush1.msra.mxu0 0.0
    %669 = vmatprep.subr.mxu0 0.0
    %670 = vmatpush1.msra.mxu0 0.0
    %671 = vmatprep.subr.mxu0 0.0
    %672 = vmatpush1.msra.mxu0 0.0
    %673 = vmatprep.subr.mxu0 0.0
    %674 = vmatpush1.msra.mxu0 0.0
    %675 = vmatprep.subr.mxu0 0.0
    %676 = vmatpush1.msra.mxu0 0.0
    %677 = vmatprep.subr.mxu0 0.0
    %678 = vmatpush1.msra.mxu0 0.0
    %679 = vmatprep.subr.mxu0 0.0
    %680 = vmatpush1.msra.mxu0 0.0
    %681 = vmatprep.subr.mxu0 0.0
    %682 = vmatpush1.msra.mxu0 0.0
    %683 = vmatprep.subr.mxu0 0.0
    %684 = vmatpush1.msra.mxu0 0.0
    %685 = vmatprep.subr.mxu0 0.0
    %686 = vmatpush1.msra.mxu0 0.0
    %687 = vmatprep.subr.mxu0 0.0
    %688 = vmatpush1.msra.mxu0 0.0
    %689 = vmatprep.subr.mxu0 0.0
    %690 = vmatpush1.msra.mxu0 0.0
    %691 = vmatprep.subr.mxu0 0.0
    %692 = vmatpush1.msra.mxu0 0.0
    %693 = vmatprep.subr.mxu0 0.0
    %694 = vmatpush1.msra.mxu0 0.0
    %695 = vmatprep.subr.mxu0 0.0
    %696 = vmatpush1.msra.mxu0 0.0
    %697 = vmatprep.subr.mxu0 0.0
    %698 = vmatpush1.msra.mxu0 0.0
    %699 = vmatprep.subr.mxu0 0.0
    %700 = vmatpush1.msra.mxu0 0.0
    %701 = vmatprep.subr.mxu0 0.0
    %702 = vmatpush1.msra.mxu0 0.0
    %703 = vmatprep.subr.mxu0 0.0
    %704 = vmatpush1.msra.mxu0 0.0
    %705 = vmatprep.subr.mxu0 0.0
    %706 = vmatpush1.msra.mxu0 0.0
    %707 = vmatprep.mubr.f32.mxu0 0.0
    %708 = vmatmul.mubr.f32.gmra.mrb[0].mxu0 %v641
    %v709 = vpop.f32.mrb[0].mxu0
    %v710 = vadd.f32 0.0, %v709
    %v711 = vpop.f32.mrb[0].mxu0
    %712 = vdwg.mxu0
    %v713 = vrcp.pop %v710
    %v714 = vmul.f32 %v710, %v713
    %v715 = vsub.f32 2.0, %v714
    %v716 = vmul.f32 %v713, %v715
    %v717 = vmul.f32 %v634, %v716
    %v718 = vld [vmem:[%s9] sm:$0xff]
    %v719 = vld [vmem:[%s9 + $0x8] sm:$0xff]
    %v720 = vld [vmem:[%s9 + $0x10] sm:$0xff]
    %v721 = vld [vmem:[%s9 + $0x18] sm:$0xff]
    %v723 = vsel %vm639, %v717, 0
    %725 = vmatprep.subr.mxu0 0.0
    %726 = vmatpush1.msra.mxu0 %v718
    %727 = vmatprep.subr.mxu0 0.0
    %728 = vmatpush1.msra.mxu0 %v719
    %729 = vmatprep.subr.mxu0 0.0
    %730 = vmatpush1.msra.mxu0 %v720
    %731 = vmatprep.subr.mxu0 0.0
    %732 = vmatpush1.msra.mxu0 %v721
    %733 = vmatprep.subr.mxu0 0.0
    %734 = vmatpush1.msra.mxu0 0.0
    %735 = vmatprep.subr.mxu0 0.0
    %736 = vmatpush1.msra.mxu0 0.0
    %737 = vmatprep.subr.mxu0 0.0
    %738 = vmatpush1.msra.mxu0 0.0
    %739 = vmatprep.subr.mxu0 0.0
    %740 = vmatpush1.msra.mxu0 0.0
    %741 = vmatprep.subr.mxu0 0.0
    %742 = vmatpush1.msra.mxu0 0.0
    %743 = vmatprep.subr.mxu0 0.0
    %744 = vmatpush1.msra.mxu0 0.0
    %745 = vmatprep.subr.mxu0 0.0
    %746 = vmatpush1.msra.mxu0 0.0
    %747 = vmatprep.subr.mxu0 0.0
    %748 = vmatpush1.msra.mxu0 0.0
    %749 = vmatprep.subr.mxu0 0.0
    %750 = vmatpush1.msra.mxu0 0.0
    %751 = vmatprep.subr.mxu0 0.0
    %752 = vmatpush1.msra.mxu0 0.0
    %753 = vmatprep.subr.mxu0 0.0
    %754 = vmatpush1.msra.mxu0 0.0
    %755 = vmatprep.subr.mxu0 0.0
    %756 = vmatpush1.msra.mxu0 0.0
    %757 = vmatprep.subr.mxu0 0.0
    %758 = vmatpush1.msra.mxu0 0.0
    %759 = vmatprep.subr.mxu0 0.0
    %760 = vmatpush1.msra.mxu0 0.0
    %761 = vmatprep.subr.mxu0 0.0
    %762 = vmatpush1.msra.mxu0 0.0
    %763 = vmatprep.subr.mxu0 0.0
    %764 = vmatpush1.msra.mxu0 0.0
    %765 = vmatprep.subr.mxu0 0.0
    %766 = vmatpush1.msra.mxu0 0.0
    %767 = vmatprep.subr.mxu0 0.0
    %768 = vmatpush1.msra.mxu0 0.0
    %769 = vmatprep.subr.mxu0 0.0
    %770 = vmatpush1.msra.mxu0 0.0
    %771 = vmatprep.subr.mxu0 0.0
    %772 = vmatpush1.msra.mxu0 0.0
    %773 = vmatprep.subr.mxu0 0.0
    %774 = vmatpush1.msra.mxu0 0.0
    %775 = vmatprep.subr.mxu0 0.0
    %776 = vmatpush1.msra.mxu0 0.0
    %777 = vmatprep.subr.mxu0 0.0
    %778 = vmatpush1.msra.mxu0 0.0
    %779 = vmatprep.subr.mxu0 0.0
    %780 = vmatpush1.msra.mxu0 0.0
    %781 = vmatprep.subr.mxu0 0.0
    %782 = vmatpush1.msra.mxu0 0.0
    %783 = vmatprep.subr.mxu0 0.0
    %784 = vmatpush1.msra.mxu0 0.0
    %785 = vmatprep.subr.mxu0 0.0
    %786 = vmatpush1.msra.mxu0 0.0
    %787 = vmatprep.subr.mxu0 0.0
    %788 = vmatpush1.msra.mxu0 0.0
    %789 = vmatprep.mubr.f32.mxu0 0.0
    %790 = vmatmul.mubr.f32.gmra.mrb[0].mxu0 %v723
    %v791 = vpop.f32.mrb[0].mxu0
    %v792 = vadd.f32 0.0, %v791
    %v793 = vpop.f32.mrb[0].mxu0
    %794 = vdwg.mxu0
    %795 = vst.msk [vmem:[#allocation12] sm:$0xff] %vm533, %v792
    %v796 = vld [vmem:[%s10] sm:$0xff]
    %v797 = vld [vmem:[%s10 + $0x8] sm:$0xff]
    %v798 = vld [vmem:[%s10 + $0x10] sm:$0xff]
    %v799 = vld [vmem:[%s10 + $0x18] sm:$0xff]
    %v800 = vld [vmem:[%s10 + $0x20] sm:$0xff]
    %v801 = vld [vmem:[%s10 + $0x28] sm:$0xff]
    %v802 = vld [vmem:[%s10 + $0x30] sm:$0xff]
    %v803 = vld [vmem:[%s10 + $0x38] sm:$0xff]
    %804 = vmatprep.subr.mxu0 %v797
    %805 = vmatpush1.msra.mxu0 %v796
    %806 = vmatprep.subr.mxu0 %v799
    %807 = vmatpush1.msra.mxu0 %v798
    %808 = vmatprep.subr.mxu0 %v801
    %809 = vmatpush1.msra.mxu0 %v800
    %810 = vmatprep.subr.mxu0 %v803
    %811 = vmatpush1.msra.mxu0 %v802
    %812 = vmatprep.subr.mxu0 0.0
    %813 = vmatpush1.msra.mxu0 0.0
    %814 = vmatprep.subr.mxu0 0.0
    %815 = vmatpush1.msra.mxu0 0.0
    %816 = vmatprep.subr.mxu0 0.0
    %817 = vmatpush1.msra.mxu0 0.0
    %818 = vmatprep.subr.mxu0 0.0
    %819 = vmatpush1.msra.mxu0 0.0
    %820 = vmatprep.subr.mxu0 0.0
    %821 = vmatpush1.msra.mxu0 0.0
    %822 = vmatprep.subr.mxu0 0.0
    %823 = vmatpush1.msra.mxu0 0.0
    %824 = vmatprep.subr.mxu0 0.0
    %825 = vmatpush1.msra.mxu0 0.0
    %826 = vmatprep.subr.mxu0 0.0
    %827 = vmatpush1.msra.mxu0 0.0
    %828 = vmatprep.subr.mxu0 0.0
    %829 = vmatpush1.msra.mxu0 0.0
    %830 = vmatprep.subr.mxu0 0.0
    %831 = vmatpush1.msra.mxu0 0.0
    %832 = vmatprep.subr.mxu0 0.0
    %833 = vmatpush1.msra.mxu0 0.0
    %834 = vmatprep.subr.mxu0 0.0
    %835 = vmatpush1.msra.mxu0 0.0
    %836 = vmatprep.subr.mxu0 0.0
    %837 = vmatpush1.msra.mxu0 0.0
    %838 = vmatprep.subr.mxu0 0.0
    %839 = vmatpush1.msra.mxu0 0.0
    %840 = vmatprep.subr.mxu0 0.0
    %841 = vmatpush1.msra.mxu0 0.0
    %842 = vmatprep.subr.mxu0 0.0
    %843 = vmatpush1.msra.mxu0 0.0
    %844 = vmatprep.subr.mxu0 0.0
    %845 = vmatpush1.msra.mxu0 0.0
    %846 = vmatprep.subr.mxu0 0.0
    %847 = vmatpush1.msra.mxu0 0.0
    %848 = vmatprep.subr.mxu0 0.0
    %849 = vmatpush1.msra.mxu0 0.0
    %850 = vmatprep.subr.mxu0 0.0
    %851 = vmatpush1.msra.mxu0 0.0
    %852 = vmatprep.subr.mxu0 0.0
    %853 = vmatpush1.msra.mxu0 0.0
    %854 = vmatprep.subr.mxu0 0.0
    %855 = vmatpush1.msra.mxu0 0.0
    %856 = vmatprep.subr.mxu0 0.0
    %857 = vmatpush1.msra.mxu0 0.0
    %858 = vmatprep.subr.mxu0 0.0
    %859 = vmatpush1.msra.mxu0 0.0
    %860 = vmatprep.subr.mxu0 0.0
    %861 = vmatpush1.msra.mxu0 0.0
    %862 = vmatprep.subr.mxu0 0.0
    %863 = vmatpush1.msra.mxu0 0.0
    %864 = vmatprep.subr.mxu0 0.0
    %865 = vmatpush1.msra.mxu0 0.0
    %866 = vmatprep.subr.mxu0 0.0
    %867 = vmatpush1.msra.mxu0 0.0
    %868 = vmatprep.mubr.f32.mxu0 0.0
    %869 = vmatmul.mubr.f32.gmra.mrb[0].mxu0 %v723
    %v870 = vpop.f32.mrb[0].mxu0
    %v871 = vadd.f32 0.0, %v870
    %v872 = vpop.f32.mrb[0].mxu0
    %v873 = vadd.f32 0.0, %v872
    %874 = vdwg.mxu0
    %v875 = vmul.f32 %v871, %v331
    %v876 = vmul.f32 %v873, %v333
    %v877 = vld [vmem:[%s4] sm:$0xff]
    %v878 = vld [vmem:[%s4 + $0x8] sm:$0xff]
    %v879 = vld [vmem:[%s4 + $0x10] sm:$0xff]
    %v880 = vld [vmem:[%s4 + $0x18] sm:$0xff]
    %v881 = vld [vmem:[%s4 + $0x20] sm:$0xff]
    %v882 = vld [vmem:[%s4 + $0x28] sm:$0xff]
    %v883 = vld [vmem:[%s4 + $0x30] sm:$0xff]
    %v884 = vld [vmem:[%s4 + $0x38] sm:$0xff]
    %v885 = vld [vmem:[%s4 + $0x40] sm:$0xff]
    %v886 = vld [vmem:[%s4 + $0x48] sm:$0xff]
    %v887 = vld [vmem:[%s4 + $0x50] sm:$0xff]
    %v888 = vld [vmem:[%s4 + $0x58] sm:$0xff]
    %v889 = vld [vmem:[%s4 + $0x60] sm:$0xff]
    %v890 = vld [vmem:[%s4 + $0x68] sm:$0xff]
    %v891 = vld [vmem:[%s4 + $0x70] sm:$0xff]
    %v892 = vld [vmem:[%s4 + $0x78] sm:$0xff]
    %v893 = vld [vmem:[%s4 + $0x80] sm:$0xff]
    %v894 = vld [vmem:[%s4 + $0x88] sm:$0xff]
    %v895 = vld [vmem:[%s4 + $0x90] sm:$0xff]
    %v896 = vld [vmem:[%s4 + $0x98] sm:$0xff]
    %v897 = vld [vmem:[%s4 + $0xa0] sm:$0xff]
    %v898 = vld [vmem:[%s4 + $0xa8] sm:$0xff]
    %v899 = vld [vmem:[%s4 + $0xb0] sm:$0xff]
    %v900 = vld [vmem:[%s4 + $0xb8] sm:$0xff]
    %v901 = vld [vmem:[%s4 + $0xc0] sm:$0xff]
    %v902 = vld [vmem:[%s4 + $0xc8] sm:$0xff]
    %v903 = vld [vmem:[%s4 + $0xd0] sm:$0xff]
    %v904 = vld [vmem:[%s4 + $0xd8] sm:$0xff]
    %v905 = vld [vmem:[%s4 + $0xe0] sm:$0xff]
    %v906 = vld [vmem:[%s4 + $0xe8] sm:$0xff]
    %v907 = vld [vmem:[%s4 + $0xf0] sm:$0xff]
    %v908 = vld [vmem:[%s4 + $0xf8] sm:$0xff]
    %909 = vmatprep.subr.mxu0 0.0
    %910 = vmatpush1.msra.mxu0 %v877
    %911 = vmatprep.subr.mxu0 0.0
    %912 = vmatpush1.msra.mxu0 %v878
    %913 = vmatprep.subr.mxu0 0.0
    %914 = vmatpush1.msra.mxu0 %v879
    %915 = vmatprep.subr.mxu0 0.0
    %916 = vmatpush1.msra.mxu0 %v880
    %917 = vmatprep.subr.mxu0 0.0
    %918 = vmatpush1.msra.mxu0 %v881
    %919 = vmatprep.subr.mxu0 0.0
    %920 = vmatpush1.msra.mxu0 %v882
    %921 = vmatprep.subr.mxu0 0.0
    %922 = vmatpush1.msra.mxu0 %v883
    %923 = vmatprep.subr.mxu0 0.0
    %924 = vmatpush1.msra.mxu0 %v884
    %925 = vmatprep.subr.mxu0 0.0
    %926 = vmatpush1.msra.mxu0 %v885
    %927 = vmatprep.subr.mxu0 0.0
    %928 = vmatpush1.msra.mxu0 %v886
    %929 = vmatprep.subr.mxu0 0.0
    %930 = vmatpush1.msra.mxu0 %v887
    %931 = vmatprep.subr.mxu0 0.0
    %932 = vmatpush1.msra.mxu0 %v888
    %933 = vmatprep.subr.mxu0 0.0
    %934 = vmatpush1.msra.mxu0 %v889
    %935 = vmatprep.subr.mxu0 0.0
    %936 = vmatpush1.msra.mxu0 %v890
    %937 = vmatprep.subr.mxu0 0.0
    %938 = vmatpush1.msra.mxu0 %v891
    %939 = vmatprep.subr.mxu0 0.0
    %940 = vmatpush1.msra.mxu0 %v892
    %941 = vmatprep.subr.mxu0 0.0
    %942 = vmatpush1.msra.mxu0 %v893
    %943 = vmatprep.subr.mxu0 0.0
    %944 = vmatpush1.msra.mxu0 %v894
    %945 = vmatprep.subr.mxu0 0.0
    %946 = vmatpush1.msra.mxu0 %v895
    %947 = vmatprep.subr.mxu0 0.0
    %948 = vmatpush1.msra.mxu0 %v896
    %949 = vmatprep.subr.mxu0 0.0
    %950 = vmatpush1.msra.mxu0 %v897
    %951 = vmatprep.subr.mxu0 0.0
    %952 = vmatpush1.msra.mxu0 %v898
    %953 = vmatprep.subr.mxu0 0.0
    %954 = vmatpush1.msra.mxu0 %v899
    %955 = vmatprep.subr.mxu0 0.0
    %956 = vmatpush1.msra.mxu0 %v900
    %957 = vmatprep.subr.mxu0 0.0
    %958 = vmatpush1.msra.mxu0 %v901
    %959 = vmatprep.subr.mxu0 0.0
    %960 = vmatpush1.msra.mxu0 %v902
    %961 = vmatprep.subr.mxu0 0.0
    %962 = vmatpush1.msra.mxu0 %v903
    %963 = vmatprep.subr.mxu0 0.0
    %964 = vmatpush1.msra.mxu0 %v904
    %965 = vmatprep.subr.mxu0 0.0
    %966 = vmatpush1.msra.mxu0 %v905
    %967 = vmatprep.subr.mxu0 0.0
    %968 = vmatpush1.msra.mxu0 %v906
    %969 = vmatprep.subr.mxu0 0.0
    %970 = vmatpush1.msra.mxu0 %v907
    %971 = vmatprep.subr.mxu0 0.0
    %972 = vmatpush1.msra.mxu0 %v908
    %973 = vmatprep.mubr.f32.mxu0 %v876
    %974 = vmatmul.mubr.f32.gmra.mrb[0].mxu0 %v875
    %v975 = vpop.f32.mrb[0].mxu0
    %v976 = vadd.f32 %v107, %v975
    %v977 = vpop.f32.mrb[0].mxu0
    %978 = vdwg.mxu0
    %979 = vst.msk [vmem:[#allocation11] sm:$0xff] %vm639, %v976
    // Predicated region
    $region66: #{tpu_custom_call.1} parent=1 // pred_check
      _
    $region67: #{tpu_custom_call.1} parent=1 // pred_check_branch
      %981 = sbr.rel (0) target = $region69
    $region68: #{tpu_custom_call.1} parent=1 // pred_region
      %s983 = ssub.s32 128, 128
      %984 = vsyncadd [#allocation4], %s983
      %s986 = sshll.u32 [#allocation11], 4
      %s987 = int_to_ptr.vmem [resolvable:$true] %s986
      %989 = dma.vmem_to_hbm [thread:$0]  %s987, 128, %s11, [#allocation4]
    $region69: #{tpu_custom_call.1} parent=1 // pred_fallthru
      _
    // Predicated region
    $region70: #{tpu_custom_call.1} parent=1 // pred_check
      _
    $region71: #{tpu_custom_call.1} parent=1 // pred_check_branch
      %991 = sbr.rel (0) target = $region73
    $region72: #{tpu_custom_call.1} parent=1 // pred_region
      %s993 = ssub.s32 128, 128
      %994 = vsyncadd [#allocation13], %s993
      %s996 = sshll.u32 [#allocation12], 4
      %s997 = int_to_ptr.vmem [resolvable:$true] %s996
      %999 = dma.vmem_to_hbm [thread:$0]  %s997, 128, %s12, [#allocation13]
    $region73: #{tpu_custom_call.1} parent=1 // pred_fallthru
      _
    // Predicated region
    $region74: #{tpu_custom_call.1} parent=1 // pred_check
      _
    $region75: #{tpu_custom_call.1} parent=1 // pred_check_branch
      %1001 = sbr.rel (0) target = $region77
    $region76: #{tpu_custom_call.1} parent=1 // pred_region
      %1002 = dma.done [#allocation4], 128
    $region77: #{tpu_custom_call.1} parent=1 // pred_fallthru
      _
    // Predicated region
    $region78: #{tpu_custom_call.1} parent=1 // pred_check
      _
    $region79: #{tpu_custom_call.1} parent=1 // pred_check_branch
      %1004 = sbr.rel (0) target = $region81
    $region80: #{tpu_custom_call.1} parent=1 // pred_region
      %1005 = dma.done [#allocation13], 128
    $region81: #{tpu_custom_call.1} parent=1 // pred_fallthru
      _
    %1006 = vsyncpa [#allocation3], 1
    %1007 = vsyncpa [#allocation6], 1
    %1008 = vsyncpa [#allocation9], 1
    %1009 = vsyncpa [#allocation4], 1
    %1010 = vsyncpa [#allocation13], 1

</llo_original>
